<compile_context>
chip_gen: v5e
topology: v5e:2x2
jax: 0.10.0
libtpu: 0.0.40
codegen_flags: <defaults>
</compile_context>

<pallas_src>
import jax
import jax.numpy as jnp
from jax.experimental import pallas as pl
from jax.experimental.pallas import tpu as pltpu


def minibatch_std_kernel(x_ref, out_ref, ms_ref):
    # x_ref   : (B, C, N) VMEM, resident across the grid (constant index_map)
    # out_ref : (C+1, N)  VMEM block for batch element b
    # ms_ref  : (1,)      SMEM f32 scratch holding mean(std) across grid steps
    b = pl.program_id(0)
    B = x_ref.shape[0]
    N = x_ref.shape[2]

    # Compute the scalar mean-of-batch-std exactly once (first grid step).
    @pl.when(b == 0)
    def _():
        x = x_ref[...].astype(jnp.float32)                     # (B, C, N)
        mu = jnp.mean(x, axis=0, keepdims=True)                # (1, C, N)
        d = x - mu
        var = jnp.sum(d * d, axis=0) / (B - 1)                 # unbiased, matches torch.std
        ms_ref[0] = jnp.mean(jnp.sqrt(var))                    # scalar -> SMEM

    # Emit this batch element: [std_row ; x[b]]  -> single lane-dense block store.
    xb = x_ref[b].astype(out_ref.dtype)                        # (C, N), dynamic batch index
    std_row = jnp.full((1, N), ms_ref[0], out_ref.dtype)       # (1, N)
    out_ref[...] = jnp.concatenate([std_row, xb], axis=0)      # (C+1, N)


def minibatch_std(x_nchw):
    """x_nchw: (B, C, H, W).  Returns (B, C+1, H, W) with channel 0 = mean batch-std."""
    B, C, H, W = x_nchw.shape
    assert B >= 2, "MiniBatchSTD needs batch >= 2 (unbiased std over batch)"
    N = H * W

    x3 = x_nchw.reshape(B, C, N)        # free: same HBM layout as NCHW

    out3 = pl.pallas_call(
        minibatch_std_kernel,
        out_shape=jax.ShapeDtypeStruct((B, C + 1, N), x_nchw.dtype),
        grid=(B,),
        in_specs=[
            # Full x, constant block index -> single DMA, stays resident in VMEM.
            pl.BlockSpec((B, C, N), lambda b: (0, 0, 0)),
        ],
        out_specs=pl.BlockSpec((None, C + 1, N), lambda b: (b, 0, 0)),
        scratch_shapes=[pltpu.SMEM((1,), jnp.float32)],
        compiler_params=pltpu.CompilerParams(
            # step 0 produces the scalar consumed by later steps -> sequential axis
            dimension_semantics=("arbitrary",)),
    )(x3)

    return out3.reshape(B, C + 1, H, W)


# ---------------- pure-JAX reference (mirrors the torch module) ----------------

def reference(x):
    B, C, H, W = x.shape
    std_feat_map = jnp.std(x, axis=0, ddof=1)          # torch.std default: unbiased
    mean_std = jnp.mean(std_feat_map)
    std_ch = jnp.full((B, 1, H, W), mean_std, x.dtype)
    return jnp.concatenate([std_ch, x], axis=1)


if __name__ == "__main__":
    key = jax.random.PRNGKey(0)
    B, C, H, W = 2, 4, 16, 16
    x = jax.random.normal(key, (B, C, H, W), jnp.float32)

    out = jax.block_until_ready(minibatch_std(x))
    ref = reference(x)

    assert out.shape == (B, C + 1, H, W)
    assert jnp.allclose(out, ref, atol=1e-5, rtol=1e-5), \
        float(jnp.max(jnp.abs(out - ref)))
    print("KERNEL_OK")
</pallas_src>

<mosaic_0001>
module attributes {stable_mosaic.version = 11 : i64} {
  func.func @minibatch_std_kernel(%arg0: i32, %arg1: memref<2x4x256xf32, #tpu.memory_space<vmem>>, %arg2: memref<1x5x256xf32, #tpu.memory_space<vmem>>, %arg3: memref<1xf32, #tpu.memory_space<smem>>) attributes {dimension_semantics = [#tpu.dimension_semantics<arbitrary>], iteration_bounds = array<i64: 2>, scalar_prefetch = 0 : i64, scratch_operands = 1 : i64, tpu.core_type = #tpu.core_type<tc>, window_params = [{pipeline_mode = #tpu.pipeline_mode<synchronous>, transform_indices = @transform_0, window_bounds = array<i64: 2, 4, 256>}, {transform_indices = @transform_1, window_bounds = array<i64: 1, 5, 256>}]} {
    %c0_i32 = arith.constant 0 : i32
    %0 = arith.cmpi eq, %arg0, %c0_i32 : i32
    %1 = arith.extui %0 : i1 to i32
    %c0_i32_0 = arith.constant 0 : i32
    %2 = arith.cmpi ne, %1, %c0_i32_0 : i32
    scf.if %2 {
      %c0_6 = arith.constant 0 : index
      %c0_7 = arith.constant 0 : index
      %c0_8 = arith.constant 0 : index
      %12 = vector.load %arg1[%c0_6, %c0_7, %c0_8] : memref<2x4x256xf32, #tpu.memory_space<vmem>>, vector<2x4x256xf32>
      %cst = arith.constant dense<0.000000e+00> : vector<4x256xf32>
      %13 = vector.multi_reduction <add>, %12, %cst [0] : vector<2x4x256xf32> to vector<4x256xf32>
      %14 = vector.shape_cast %13 : vector<4x256xf32> to vector<1x4x256xf32>
      %cst_9 = arith.constant 2.000000e+00 : f32
      %15 = vector.broadcast %cst_9 : f32 to vector<1x4x256xf32>
      %16 = arith.divf %14, %15 : vector<1x4x256xf32>
      %17 = vector.broadcast %16 : vector<1x4x256xf32> to vector<2x4x256xf32>
      %18 = arith.subf %12, %17 : vector<2x4x256xf32>
      %19 = arith.mulf %18, %18 : vector<2x4x256xf32>
      %cst_10 = arith.constant dense<0.000000e+00> : vector<4x256xf32>
      %20 = vector.multi_reduction <add>, %19, %cst_10 [0] : vector<2x4x256xf32> to vector<4x256xf32>
      %cst_11 = arith.constant 1.000000e+00 : f32
      %21 = vector.broadcast %cst_11 : f32 to vector<4x256xf32>
      %22 = arith.divf %20, %21 : vector<4x256xf32>
      %23 = math.sqrt %22 : vector<4x256xf32>
      %24 = vector.shape_cast %23 : vector<4x256xf32> to vector<1x4x256xf32>
      %cst_12 = arith.constant dense<0.000000e+00> : vector<1xf32>
      %25 = vector.multi_reduction <add>, %24, %cst_12 [1, 2] : vector<1x4x256xf32> to vector<1xf32>
      %26 = vector.shape_cast %25 : vector<1xf32> to vector<1x1x1xf32>
      %27 = vector.extract %26[0, 0, 0] : f32 from vector<1x1x1xf32>
      %cst_13 = arith.constant 1.024000e+03 : f32
      %28 = arith.divf %27, %cst_13 : f32
      %c0_14 = arith.constant 0 : index
      %29 = memref.load %arg3[%c0_14] : memref<1xf32, #tpu.memory_space<smem>>
      memref.store %28, %arg3[%c0_14] : memref<1xf32, #tpu.memory_space<smem>>
    } else {
    }
    %3 = arith.index_cast %arg0 : i32 to index
    %c0 = arith.constant 0 : index
    %c0_1 = arith.constant 0 : index
    %4 = vector.load %arg1[%3, %c0, %c0_1] : memref<2x4x256xf32, #tpu.memory_space<vmem>>, vector<1x4x256xf32>
    %5 = vector.shape_cast %4 : vector<1x4x256xf32> to vector<4x256xf32>
    %c0_2 = arith.constant 0 : index
    %6 = memref.load %arg3[%c0_2] : memref<1xf32, #tpu.memory_space<smem>>
    %7 = vector.broadcast %6 : f32 to vector<1x256xf32>
    %8 = tpu.concatenate %7, %5 in 0 : vector<1x256xf32>, vector<4x256xf32> -> vector<5x256xf32>
    %c0_3 = arith.constant 0 : index
    %c0_4 = arith.constant 0 : index
    %c0_5 = arith.constant 0 : index
    %9 = vector.load %arg2[%c0_3, %c0_4, %c0_5] : memref<1x5x256xf32, #tpu.memory_space<vmem>>, vector<1x5x256xf32>
    %10 = vector.shape_cast %9 : vector<1x5x256xf32> to vector<5x256xf32>
    %11 = vector.shape_cast %8 : vector<5x256xf32> to vector<1x5x256xf32>
    tpu.vector_store %arg2[%c0_3, %c0_4, %c0_5], %11 {strides = array<i32>} : memref<1x5x256xf32, #tpu.memory_space<vmem>>, vector<1x5x256xf32>,
    return
  }
  func.func @transform_0(%arg0: i32) -> (i32, i32, i32) {
    %c0_i32 = arith.constant 0 : i32
    %c0_i32_0 = arith.constant 0 : i32
    %c0_i32_1 = arith.constant 0 : i32
    %c0_i32_2 = arith.constant 0 : i32
    return %c0_i32, %c0_i32_0, %c0_i32_1 : i32, i32, i32
  }
  func.func @transform_1(%arg0: i32) -> (i32, i32, i32) {
    %c0_i32 = arith.constant 0 : i32
    %c0_i32_0 = arith.constant 0 : i32
    %c0_i32_1 = arith.constant 0 : i32
    return %arg0, %c0_i32, %c0_i32_0 : i32, i32, i32
  }
}

</mosaic_0001>

<llo_original>
// kernel: tpu_custom_call.1
$region0: #{tpu_custom_call.1}
  #allocation0 [shape = 'u32[]', space=smem, size = 0x4, offset = 0x4, fixed_abs, tag = 'smem constant byte address 0x4 - core index']
  #allocation1 [shape = 'u32[72,128]{1,0:T(1,128)}', space=vmem, size = 0x9000, scoped, tag = 'internal scratch']
  #allocation2 [shape = 'f32[1]{0:T(128)}', space=smem, size = 0x200, scoped, tag = 'scratch operand']
  %s0 = inlined_call_operand.hbm [shape: f32[2,4,256], index: 0, kind: input, shape index: {}]
  %s1 = inlined_call_operand.vmem [shape: f32[2,5,256], index: 1, kind: output, shape index: {}]
  %s2 = sld [smem:[#allocation0]]
  $region45: #{tpu_custom_call.1} parent=0
    _
  %s4 = ssub.s32 1, %s2
  %s5 = scalar_select 0, %s4, %s2
  $region1: #{tpu_custom_call.1} parent=0
    #allocation3 [shape = 'u8[8192]{0}', space=vmem, size = 0x2000, scoped, tag = 'input window, operand 0, single buffered']
    #allocation4 [shape = 's32[2]{0}', space=sflag, size = 0x8, scoped, tag = 'scoped memory for tpu_custom_call.1']
    %6 = vsyncpa [#allocation4], 0
    loop: start=0, step=1, limit=4
    $region2: #{tpu_custom_call.1} parent=1 // loop_pre_header
      _
    $region3: #{tpu_custom_call.1} parent=1 // loop_header
      %s8 = sphi 0, %s12
      %p9 = scmp.ge.s32.totalorder %s8, 4
      %s16 = sphi 0, %s16
      %s18 = sphi 0, %s16
      %s19 = sphi 0, %s18
      %s33 = sphi 0, %s19
      %s39 = sphi 0, %s41
      %s42 = sphi 0, %s39
      %s43 = sphi 0, %s42
      %s59 = sphi 0, %s43
    $region4: #{tpu_custom_call.1} parent=1 // loop_header_branch
      %11 = sbr.rel (%p9) target = $region8
    $region5: #{tpu_custom_call.1} parent=1 // loop_body
      %s13 = ssub.s32 %s8, 1
      %s14 = ssub.s32 %s8, 2
      %s15 = sadd.s32 %s8, 1
      %s17 = sadd.s32 %s16, 1
      %p20 = scmp.eq.s32.totalorder %s8, 1
      %p21 = scmp.ne.s32.totalorder %s16, %s18
      %p22 = scmp.eq.s32.totalorder %s8, 0
      %p23 = por %p21, %p22
      %p24 = scmp.ne.s32.totalorder %s16, %s18
      %p25 = scmp.eq.s32.totalorder %s13, 1
      %p26 = por %p24, %p25
      %p27 = scmp.ne.s32.totalorder %s18, %s19
      %p28 = scmp.eq.s32.totalorder %s13, 0
      %p29 = por %p27, %p28
      %p30 = scmp.ne.s32.totalorder %s18, %s19
      %p31 = scmp.eq.s32.totalorder %s14, 1
      %p32 = por %p30, %p31
      %p34 = scmp.ne.s32.totalorder %s19, %s33
      %p35 = scmp.eq.s32.totalorder %s14, 0
      %p36 = por %p34, %p35
      %s37 = ssub.s32 %s8, %s15
      %p38 = scmp.eq.s32.totalorder %s37, 0
      %s40 = sadd.s32 %s39, 1
      %s41 = scalar_select %p38, %s39, %s40
      %p44 = pneg %p38
      %p45 = scmp.eq.s32.totalorder %s8, 1
      %p46 = por %p44, %p45
      %p47 = scmp.ne.s32.totalorder %s39, %s42
      %p48 = scmp.eq.s32.totalorder %s8, 0
      %p49 = por %p47, %p48
      %p50 = scmp.ne.s32.totalorder %s39, %s42
      %p51 = scmp.eq.s32.totalorder %s13, 1
      %p52 = por %p50, %p51
      %p53 = scmp.ne.s32.totalorder %s42, %s43
      %p54 = scmp.eq.s32.totalorder %s13, 0
      %p55 = por %p53, %p54
      %p56 = scmp.ne.s32.totalorder %s42, %s43
      %p57 = scmp.eq.s32.totalorder %s14, 1
      %p58 = por %p56, %p57
      %p60 = scmp.ne.s32.totalorder %s43, %s59
      %p61 = scmp.eq.s32.totalorder %s14, 0
      %p62 = por %p60, %p61
      %p63 = scmp.le.s32.totalorder 1, %s8
      %p64 = scmp.lt.s32.totalorder %s8, 3
      %p65 = pnand %p63, %p64
      %p66 = pneg %p65
      // Predicated region
      $region9: #{tpu_custom_call.1} parent=5 // pred_check
        _
      $region10: #{tpu_custom_call.1} parent=5 // pred_check_branch
        %68 = sbr.rel (%p65) target = $region12
      $region11: #{tpu_custom_call.1} parent=5 // pred_region
        %s69 = ssub.s32 %s8, 1
        // Predicated region
        $region13: #{tpu_custom_call.1} parent=11 // pred_check
          %p70 = pneg %p29
        $region14: #{tpu_custom_call.1} parent=11 // pred_check_branch
          %72 = sbr.rel (%p70) target = $region16
        $region15: #{tpu_custom_call.1} parent=11 // pred_region
          %74 = vsyncadd [#allocation4], 0
          %s75 = sshll.u32 %s0, 4
          %s76 = int_to_ptr.hbm [resolvable:$true] %s75
          %s77 = sshll.u32 [#allocation3], 4
          %s78 = int_to_ptr.vmem [resolvable:$true] %s77
          %83 = dma.hbm_to_vmem [thread:$0]  %s76, 256, %s78, [#allocation4], 128, 128, 8
        $region16: #{tpu_custom_call.1} parent=11 // pred_fallthru
          _
      $region12: #{tpu_custom_call.1} parent=5 // pred_fallthru
        _
      %p84 = scmp.lt.s32.totalorder %s8, 2
      // Predicated region
      $region17: #{tpu_custom_call.1} parent=5 // pred_check
        %p85 = pneg %p84
      $region18: #{tpu_custom_call.1} parent=5 // pred_check_branch
        %87 = sbr.rel (%p85) target = $region20
      $region19: #{tpu_custom_call.1} parent=5 // pred_region
        _
      $region20: #{tpu_custom_call.1} parent=5 // pred_fallthru
        _
      %p88 = scmp.le.s32.totalorder 1, %s8
      %p89 = scmp.lt.s32.totalorder %s8, 3
      %p90 = pnand %p88, %p89
      %p91 = pneg %p90
      // Predicated region
      $region21: #{tpu_custom_call.1} parent=5 // pred_check
        _
      $region22: #{tpu_custom_call.1} parent=5 // pred_check_branch
        %93 = sbr.rel (%p90) target = $region24
      $region23: #{tpu_custom_call.1} parent=5 // pred_region
        %s94 = ssub.s32 %s8, 1
        // Predicated region
        $region25: #{tpu_custom_call.1} parent=23 // pred_check
          %p95 = pneg %p29
        $region26: #{tpu_custom_call.1} parent=23 // pred_check_branch
          %97 = sbr.rel (%p95) target = $region28
        $region27: #{tpu_custom_call.1} parent=23 // pred_region
          %99 = dma.done [#allocation4], 256
        $region28: #{tpu_custom_call.1} parent=23 // pred_fallthru
          _
        %p100 = pneg %p29
        %p101 = pneg %p26
        %p102 = pneg %p55
        %p103 = pneg %p52
        %p104 = scmp.lt.s32.totalorder %s13, 1
        %s105 = scalar_select %p104, %s13, 1
        %s106 = smul.addr %s105, 2
        %s107 = smul.addr %s106, 8
        %s108 = scalar_lea.vmem %s1, %s107
        %p109 = scmp.lt.s32.totalorder %s13, 1
        %s110 = scalar_select %p109, %s13, 1
        %s111 = smul.addr %s110, 2
        %s112 = smul.addr %s111, 8
        %s113 = scalar_lea.vmem %s1, %s112
        %p114 = scmp.eq.s32.totalorder %s13, 0
        // Predicated region
        $region29: #{tpu_custom_call.1} parent=23 // pred_check
          %p115 = pneg %p114
        $region30: #{tpu_custom_call.1} parent=23 // pred_check_branch
          %117 = sbr.rel (%p115) target = $region32
        $region31: #{tpu_custom_call.1} parent=23 // pred_region
          %v118 = vld [vmem:[#allocation3] sm:$0xff]
          %v119 = vld [vmem:[#allocation3 + $0x8] sm:$0xff]
          %122 = vst [vmem:[#allocation1] ss:$2 sm:$0xff] %v118
          %v123 = vld.sshfl [vmem:[#allocation1] sm:$0xff pattern:$0x75316420]
          %v124 = vld.sshfl [vmem:[#allocation1 + $0x8] sm:$0xff pattern:$0x75316420]
          %s125 = scalar_lea.vmem [#allocation1], 16
          %126 = vst [vmem:[%s125] ss:$2 sm:$0xff] %v119
          %v127 = vld.sshfl [vmem:[#allocation1 + $0x10] sm:$0xff pattern:$0x75316420]
          %v128 = vld.sshfl [vmem:[#allocation1 + $0x18] sm:$0xff pattern:$0x75316420]
          %vm133 = vcmask 1043456
          %v134 = vsel %vm133, %v123, 0.0
          %v135 = vsel %vm133, %v127, 0.0
          %v136 = vadd.f32 %v134, %v135
          %v137 = vsel %vm133, %v124, 0.0
          %v138 = vsel %vm133, %v128, 0.0
          %v139 = vadd.f32 %v137, %v138
          %v140 = vrcp.pop 2.0
          %v141 = vmul.f32 2.0, %v140
          %v142 = vsub.f32 1.0, %v141
          %v143 = vmul.f32 %v140, %v142
          %v144 = vadd.f32 %v140, %v143
          %vm145 = vweird.f32 %v140
          %v146 = vsel %vm145, %v140, %v144
          %v147 = vmul.f32 %v136, %v146
          %v148 = vmul.f32 %v139, %v146
          %v151 = vrot.slane %v148, 4
          %v152 = vsel %vm133, %v147, %v151
          %v154 = vsub.f32 %v118, %v152
          %v155 = vsub.f32 %v119, %v152
          %v156 = vmul.f32 %v154, %v154
          %v157 = vmul.f32 %v155, %v155
          %160 = vst [vmem:[#allocation1] ss:$2 sm:$0xff] %v156
          %v161 = vld.sshfl [vmem:[#allocation1] sm:$0xff pattern:$0x75316420]
          %v162 = vld.sshfl [vmem:[#allocation1 + $0x8] sm:$0xff pattern:$0x75316420]
          %s163 = scalar_lea.vmem [#allocation1], 16
          %164 = vst [vmem:[%s163] ss:$2 sm:$0xff] %v157
          %v165 = vld.sshfl [vmem:[#allocation1 + $0x10] sm:$0xff pattern:$0x75316420]
          %v166 = vld.sshfl [vmem:[#allocation1 + $0x18] sm:$0xff pattern:$0x75316420]
          %v171 = vsel %vm133, %v161, 0.0
          %v172 = vsel %vm133, %v165, 0.0
          %v173 = vadd.f32 %v171, %v172
          %v174 = vsel %vm133, %v162, 0.0
          %v175 = vsel %vm133, %v166, 0.0
          %v176 = vadd.f32 %v174, %v175
          %v177 = vrsqrt.pop %v173
          %v178 = vmul.f32 %v177, %v173
          %v179 = vmul.f32 %v178, %v177
          %v180 = vmul.f32 0.5, %v179
          %v181 = vsub.f32 1.5, %v180
          %v182 = vmul.f32 %v177, %v181
          %v183 = vmul.f32 %v173, %v182
          %vm184 = vcmp.eq.f32.partialorder %v173, inf
          %v185 = vsel %vm184, %v173, %v183
          %vm186 = vcmp.eq.f32.partialorder %v173, 0.0
          %v187 = vand.u32 %v173, 2147483648
          %v188 = vsel %vm186, %v187, %v185
          %v189 = vrsqrt.pop %v176
          %v190 = vmul.f32 %v189, %v176
          %v191 = vmul.f32 %v190, %v189
          %v192 = vmul.f32 0.5, %v191
          %v193 = vsub.f32 1.5, %v192
          %v194 = vmul.f32 %v189, %v193
          %v195 = vmul.f32 %v176, %v194
          %vm196 = vcmp.eq.f32.partialorder %v176, inf
          %v197 = vsel %vm196, %v176, %v195
          %vm198 = vcmp.eq.f32.partialorder %v176, 0.0
          %v199 = vand.u32 %v176, 2147483648
          %v200 = vsel %vm198, %v199, %v197
          %v201 = vsel %vm133, %v188, 0.0
          %v202 = vsel %vm133, %v200, 0.0
          %v203 = vadd.f32 %v201, %v202
          %204 = vadd.xlane.f32.xlu0 %v203
          %v205 = vpop.xlane.xlu0 %204
          %v206 = vrot.slane %v205, 4
          %v207 = vadd.f32 %v205, %v206
          %v208 = vrot.slane %v207, 2
          %v209 = vadd.f32 %v207, %v208
          %v210 = vrot.slane %v209, 1
          %v211 = vadd.f32 %v209, %v210
          %s212 = vtos %v211
          %v213 = vrcp.pop 1024.0
          %v214 = vmul.f32 1024.0, %v213
          %v215 = vsub.f32 1.0, %v214
          %v216 = vmul.f32 %v213, %v215
          %v217 = vadd.f32 %v213, %v216
          %vm218 = vweird.f32 %v213
          %v219 = vsel %vm218, %v213, %v217
          %s220 = vtos %v219
          %s221 = smul.f32 %s212, %s220
          %s222 = scalar_lea.smem [#allocation2], 0
          %223 = sst [smem:[%s222]] %s221
        $region32: #{tpu_custom_call.1} parent=23 // pred_fallthru
          _
        %s224 = smul.u32 %s13, 2
        %s225 = smul.addr %s224, 4
        %s226 = scalar_lea.vmem [#allocation3], %s225
        %v227 = vld [vmem:[%s226] sm:$0xff]
        %s228 = sld [smem:[#allocation2]]
        %v229 = vstv %s228
        %231 = vst [vmem:[#allocation1] ss:$2 sm:$0xff] %v227
        %v232 = vld.sshfl [vmem:[#allocation1] sm:$0xff pattern:$0x75316420]
        %v233 = vld.sshfl [vmem:[#allocation1 + $0x8] sm:$0xff pattern:$0x75316420]
        %v234 = vrot.slane %v232, 7
        %v235 = vrot.slane %v233, 7
        %vm238 = vcmask 1040384
        %v239 = vsel %vm238, %v229, %v234
        %v240 = vsel %vm238, %v229, %v235
        %241 = vst [vmem:[%s113] sm:$0x1f] %v239
        %242 = vst [vmem:[%s113 + $0x8] sm:$0x1f] %v240
        %p243 = scmp.lt.s32.totalorder %s13, 1
        %s244 = scalar_select %p243, %s13, 1
        %s245 = smul.addr %s244, 2
        %s246 = smul.addr %s245, 8
        %s247 = scalar_lea.vmem %s1, %s246
        // Predicated region
        $region33: #{tpu_custom_call.1} parent=23 // pred_check
          %p248 = pneg %p52
        $region34: #{tpu_custom_call.1} parent=23 // pred_check_branch
          %250 = sbr.rel (%p248) target = $region36
        $region35: #{tpu_custom_call.1} parent=23 // pred_region
          _
        $region36: #{tpu_custom_call.1} parent=23 // pred_fallthru
          _
      $region24: #{tpu_custom_call.1} parent=5 // pred_fallthru
        _
      %p251 = scmp.le.s32.totalorder 2, %s8
      // Predicated region
      $region37: #{tpu_custom_call.1} parent=5 // pred_check
        %p252 = pneg %p251
      $region38: #{tpu_custom_call.1} parent=5 // pred_check_branch
        %254 = sbr.rel (%p252) target = $region40
      $region39: #{tpu_custom_call.1} parent=5 // pred_region
        %s255 = ssub.s32 %s8, 2
        // Predicated region
        $region41: #{tpu_custom_call.1} parent=39 // pred_check
          %p256 = pneg %p58
        $region42: #{tpu_custom_call.1} parent=39 // pred_check_branch
          %258 = sbr.rel (%p256) target = $region44
        $region43: #{tpu_custom_call.1} parent=39 // pred_region
          %p259 = scmp.lt.s32.totalorder %s14, 1
          %s260 = scalar_select %p259, %s14, 1
          %s261 = smul.addr %s260, 2
          %s262 = smul.addr %s261, 8
          %s263 = scalar_lea.vmem %s1, %s262
        $region44: #{tpu_custom_call.1} parent=39 // pred_fallthru
          _
      $region40: #{tpu_custom_call.1} parent=5 // pred_fallthru
        _
    $region6: #{tpu_custom_call.1} parent=1 // loop_footer
      %s12 = sadd.s32 1, %s8
    $region7: #{tpu_custom_call.1} parent=1 // loop_footer_branch
      %7 = sbr.rel target = $region3
    $region8: #{tpu_custom_call.1} parent=1 // loop_exit
      _
    %264 = vsyncpa [#allocation4], 1
    %s265 = scalar_lea.sflag [#allocation4], 1
    %266 = vsyncpa %s265, 1

</llo_original>
